<compile_context>
chip_gen: v6e
topology: v6e:2x2x1
jax: 0.10.0
libtpu: 0.0.40
codegen_flags: <defaults>
</compile_context>

<pallas_src>
import jax
import jax.numpy as jnp
from jax.experimental import pallas as pl
from jax.experimental.pallas import tpu as pltpu

ALPHA = 1.0  # SDEC alpha (compile-time constant in this port)


def _round_up(n, m):
    return ((n + m - 1) // m) * m


def _cdiv(a, b):
    return -(-a // b)


def sdec_kernel(x_ref,
                w_enc_ref, b_enc_ref,      # encoder Linear (D -> He) + ReLU
                w_mu_ref, b_mu_ref,        # _enc_mu Linear (He -> Z)
                w_dec_ref, b_dec_ref,      # decoder Linear (Z -> Hd) + ReLU
                w_out_ref, b_out_ref,      # _dec Linear (Hd -> D)
                mu_t_ref, mu_sq_ref,       # mu^T (Z, K) bf16 and ||mu||^2 (1, K) f32
                z_ref, q_ref, xr_ref):
    # bf16 operands on the MXU, f32 accumulation, f32 elementwise math.
    x = x_ref[...].astype(jnp.bfloat16)                                 # (TB, Din)

    # ---- encoder: Linear + ReLU -------------------------------------------
    h = jnp.dot(x, w_enc_ref[...], preferred_element_type=jnp.float32)
    h = jnp.maximum(h + b_enc_ref[...], 0.0)                            # (TB, He) f32

    # ---- latent projection -------------------------------------------------
    z = jnp.dot(h.astype(jnp.bfloat16), w_mu_ref[...],
                preferred_element_type=jnp.float32) + b_mu_ref[...]     # (TB, Z) f32

    # ---- decoder: Linear + ReLU -------------------------------------------
    hd = jnp.dot(z.astype(jnp.bfloat16), w_dec_ref[...],
                 preferred_element_type=jnp.float32)
    hd = jnp.maximum(hd + b_dec_ref[...], 0.0)                          # (TB, Hd) f32

    # ---- reconstruction ----------------------------------------------------
    xr = jnp.dot(hd.astype(jnp.bfloat16), w_out_ref[...],
                 preferred_element_type=jnp.float32) + b_out_ref[...]   # (TB, D) f32

    # ---- soft assignment (Student's t kernel) on the MXU -------------------
    # dist2[b,k] = ||z_b||^2 + ||mu_k||^2 - 2 * z_b . mu_k
    # bf16 operands on the cross matmul; norms and the combine stay f32.
    # Padded cluster columns carry ||mu||^2 = 1e30 so their q underflows to 0.
    z_sq = jnp.sum(z * z, axis=1, keepdims=True)                        # (TB, 1) f32
    cross = jnp.dot(z.astype(jnp.bfloat16), mu_t_ref[...],
                    preferred_element_type=jnp.float32)                 # (TB, K) f32
    dist2 = jnp.maximum(z_sq + mu_sq_ref[...] - 2.0 * cross, 0.0)

    # q = 1 / (1 + dist2 / alpha); alpha == 1.0 so the divide folds away.
    q = pl.reciprocal(1.0 + dist2 * (1.0 / ALPHA), approx=True)
    # PyTorch source: q = q ** (alpha + 1.0) / 2.0  ==  (q ** 2) / 2 for
    # alpha == 1; the "/ 2" cancels in the row normalization and is dropped.
    q = q * q
    q = q * pl.reciprocal(jnp.sum(q, axis=1, keepdims=True), approx=True)

    z_ref[...] = z
    q_ref[...] = q
    xr_ref[...] = xr.astype(xr_ref.dtype)


def _pick_vmem_limit():
    """Generation-aware VMEM budget: ~48 MiB on v7x, ~100 MiB on v5e/v6e."""
    cap = 64 * 1024 * 1024
    try:
        cap = int(pltpu.get_tpu_info().vmem_capacity_bytes)
    except Exception:
        pass
    return max(32 * 1024 * 1024, min(cap - 16 * 1024 * 1024, 100 * 1024 * 1024))


def prepare_params(params):
    """One-time parameter prep (pad / transpose / cast / ||mu||^2).

    Run this once per parameter update, NOT per forward call.
    """
    (w_enc, b_enc, w_mu, b_mu, w_dec, b_dec, w_out, b_out, mu) = params
    input_dim, enc_h = w_enc.shape
    z_dim = w_mu.shape[1]
    dec_h = w_dec.shape[1]
    n_clusters = mu.shape[0]

    # Lane-dense (multiple-of-128) feature dims for everything the kernel
    # writes or contracts over, except x's input_dim which stays unpadded.
    He = _round_up(enc_h, 128)
    Z = _round_up(z_dim, 128)
    Hd = _round_up(dec_h, 128)
    D = _round_up(input_dim, 128)
    K = _round_up(n_clusters, 128)

    def pad2(a, r, c):
        return jnp.pad(a, ((0, r - a.shape[0]), (0, c - a.shape[1])))

    # bf16 MXU operands; biases / ||mu||^2 stay f32.
    w_enc_p = pad2(w_enc, input_dim, He).astype(jnp.bfloat16)  # rows stay unpadded
    b_enc_p = pad2(b_enc, 1, He)
    w_mu_p = pad2(w_mu, He, Z).astype(jnp.bfloat16)
    b_mu_p = pad2(b_mu, 1, Z)
    w_dec_p = pad2(w_dec, Z, Hd).astype(jnp.bfloat16)
    b_dec_p = pad2(b_dec, 1, Hd)
    w_out_p = pad2(w_out, Hd, D).astype(jnp.bfloat16)
    b_out_p = pad2(b_out, 1, D)

    mu_p = pad2(mu, K, Z)                                      # (K, Z) f32, zero padded
    mu_t_p = mu_p.T.astype(jnp.bfloat16)                       # (Z, K) bf16
    mu_sq = jnp.sum(mu_p * mu_p, axis=1)[None, :]              # (1, K) f32
    # Padded cluster columns -> huge distance -> q underflows to 0 (no in-kernel mask).
    k_mask = (jnp.arange(K) < n_clusters)[None, :]
    mu_sq = jnp.where(k_mask, mu_sq, jnp.float32(1e30))

    arrays = (w_enc_p, b_enc_p, w_mu_p, b_mu_p, w_dec_p, b_dec_p,
              w_out_p, b_out_p, mu_t_p, mu_sq)
    dims = dict(input_dim=input_dim, z_dim=z_dim, n_clusters=n_clusters,
                He=He, Z=Z, Hd=Hd, D=D, K=K)
    return arrays, dims


def sdec_forward(x, prepared, *, tb=1024):
    arrays, dims = prepared
    B, input_dim = x.shape
    assert input_dim == dims["input_dim"]
    He, Z, Hd, D, K = dims["He"], dims["Z"], dims["Hd"], dims["D"], dims["K"]

    # Adaptive batch tiling: keep padding to at most a few rows, keep tb a
    # multiple of 8, and keep >= 2 grid tiles when there is enough work so
    # both v7x TensorCores are used.
    B8 = _round_up(max(B, 8), 8)
    tb_eff = max(8, min(_round_up(tb, 8), B8))
    n_tiles = _cdiv(B8, tb_eff)
    if n_tiles < 2 and B8 >= 16:
        n_tiles = 2
    tb_eff = _round_up(_cdiv(B8, n_tiles), 8)
    Bp = tb_eff * n_tiles
    grid = (n_tiles,)

    # x ships unpadded in features and un-cast (bf16 cast happens in-kernel);
    # only the batch dim is padded, and only when the tiling requires it.
    x_p = x if Bp == B else jnp.pad(x, ((0, Bp - B), (0, 0)))

    def batch_spec(d):
        return pl.BlockSpec((tb_eff, d), lambda i: (i, 0))

    def resident_spec(r, c):
        # Constant index_map -> DMA'd once; single buffer (no need to double-buffer).
        return pl.BlockSpec((r, c), lambda i: (0, 0), pipeline_mode=pl.Buffered(1))

    out_shape = (
        jax.ShapeDtypeStruct((Bp, Z), jnp.float32),     # z (padded)
        jax.ShapeDtypeStruct((Bp, K), jnp.float32),     # q (padded)
        jax.ShapeDtypeStruct((Bp, D), jnp.bfloat16),    # xrecon (padded, bf16 writeback)
    )

    z_p, q_p, xr_p = pl.pallas_call(
        sdec_kernel,
        out_shape=out_shape,
        grid=grid,
        in_specs=[
            batch_spec(input_dim),                              # x
            resident_spec(input_dim, He), resident_spec(1, He), # encoder
            resident_spec(He, Z), resident_spec(1, Z),          # _enc_mu
            resident_spec(Z, Hd), resident_spec(1, Hd),         # decoder
            resident_spec(Hd, D), resident_spec(1, D),          # _dec
            resident_spec(Z, K), resident_spec(1, K),           # mu^T, ||mu||^2
        ],
        out_specs=(batch_spec(Z), batch_spec(K), batch_spec(D)),
        compiler_params=pltpu.CompilerParams(
            dimension_semantics=("parallel",),          # megacore-shard batch tiles
            vmem_limit_bytes=_pick_vmem_limit(),        # per chip generation
        ),
    )(x_p, *arrays)

    z = z_p[:B, :dims["z_dim"]]
    q = q_p[:B, :dims["n_clusters"]]
    xr = xr_p[:B, :input_dim].astype(jnp.float32)
    return z, q, xr


def sdec_forward_ref(x, params):
    """Pure-JAX f32 reference matching the PyTorch module exactly."""
    (w_enc, b_enc, w_mu, b_mu, w_dec, b_dec, w_out, b_out, mu) = params
    h = jnp.maximum(x @ w_enc + b_enc, 0.0)
    z = h @ w_mu + b_mu
    hd = jnp.maximum(z @ w_dec + b_dec, 0.0)
    xr = hd @ w_out + b_out
    dist2 = jnp.sum((z[:, None, :] - mu[None, :, :]) ** 2, axis=2)
    q = 1.0 / (1.0 + dist2 / ALPHA)
    q = q ** (ALPHA + 1.0) / 2.0
    q = q / jnp.sum(q, axis=1, keepdims=True)
    return z, q, xr


def init_params(key, input_dim, enc_hidden, z_dim, dec_hidden, n_clusters):
    ks = jax.random.split(key, 9)
    scale = 0.1

    def lin(k, fan_in, fan_out):
        kw, kb = jax.random.split(k)
        w = jax.random.normal(kw, (fan_in, fan_out), jnp.float32) * scale
        b = jax.random.normal(kb, (1, fan_out), jnp.float32) * scale
        return w, b

    w_enc, b_enc = lin(ks[0], input_dim, enc_hidden)   # encoder Linear
    w_mu, b_mu = lin(ks[1], enc_hidden, z_dim)         # _enc_mu
    w_dec, b_dec = lin(ks[2], z_dim, dec_hidden)       # decoder Linear
    w_out, b_out = lin(ks[3], dec_hidden, input_dim)   # _dec
    mu = jax.random.normal(ks[4], (n_clusters, z_dim), jnp.float32)  # cluster centers
    return (w_enc, b_enc, w_mu, b_mu, w_dec, b_dec, w_out, b_out, mu)


if __name__ == "__main__":
    # Small shapes consistent with SDEC(input_dim, z_dim, n_clusters, encodeLayer, decodeLayer)
    B, INPUT_DIM, ENC_H, Z_DIM, DEC_H, N_CLUSTERS = 8, 64, 32, 16, 32, 8

    key = jax.random.PRNGKey(0)
    k_x, k_p = jax.random.split(key)
    x = jax.random.normal(k_x, (B, INPUT_DIM), jnp.float32)
    params = init_params(k_p, INPUT_DIM, ENC_H, Z_DIM, DEC_H, N_CLUSTERS)

    prepared = prepare_params(params)       # one-time parameter prep
    z, q, xrecon = sdec_forward(x, prepared)
    jax.block_until_ready((z, q, xrecon))

    z_r, q_r, xr_r = sdec_forward_ref(x, params)
    # bf16 MXU operands (f32 accumulation), approx reciprocals and bf16 xrecon
    # writeback vs f32 reference -> relaxed tolerance.
    assert jnp.allclose(z, z_r, atol=3e-2, rtol=3e-2), "z mismatch"
    assert jnp.allclose(q, q_r, atol=3e-2, rtol=3e-2), "q mismatch"
    assert jnp.allclose(xrecon, xr_r, atol=3e-2, rtol=3e-2), "xrecon mismatch"

    print("KERNEL_OK")
</pallas_src>

<mosaic_0001>
module attributes {stable_mosaic.version = 11 : i64} {
  func.func @sdec_kernel(%arg0: i32, %arg1: memref<8x64xf32, #tpu.memory_space<vmem>>, %arg2: memref<64x128xbf16, #tpu.memory_space<vmem>>, %arg3: memref<1x128xf32, #tpu.memory_space<vmem>>, %arg4: memref<128x128xbf16, #tpu.memory_space<vmem>>, %arg5: memref<1x128xf32, #tpu.memory_space<vmem>>, %arg6: memref<128x128xbf16, #tpu.memory_space<vmem>>, %arg7: memref<1x128xf32, #tpu.memory_space<vmem>>, %arg8: memref<128x128xbf16, #tpu.memory_space<vmem>>, %arg9: memref<1x128xf32, #tpu.memory_space<vmem>>, %arg10: memref<128x128xbf16, #tpu.memory_space<vmem>>, %arg11: memref<1x128xf32, #tpu.memory_space<vmem>>, %arg12: memref<8x128xf32, #tpu.memory_space<vmem>>, %arg13: memref<8x128xf32, #tpu.memory_space<vmem>>, %arg14: memref<8x128xbf16, #tpu.memory_space<vmem>>) attributes {dimension_semantics = [#tpu.dimension_semantics<parallel>], iteration_bounds = array<i64: 1>, scalar_prefetch = 0 : i64, scratch_operands = 0 : i64, tpu.core_type = #tpu.core_type<tc>, window_params = [{transform_indices = @transform_0, window_bounds = array<i64: 8, 64>}, {pipeline_mode = #tpu.pipeline_mode<synchronous>, transform_indices = @transform_1, window_bounds = array<i64: 64, 128>}, {pipeline_mode = #tpu.pipeline_mode<synchronous>, transform_indices = @transform_2, window_bounds = array<i64: 1, 128>}, {pipeline_mode = #tpu.pipeline_mode<synchronous>, transform_indices = @transform_3, window_bounds = array<i64: 128, 128>}, {pipeline_mode = #tpu.pipeline_mode<synchronous>, transform_indices = @transform_4, window_bounds = array<i64: 1, 128>}, {pipeline_mode = #tpu.pipeline_mode<synchronous>, transform_indices = @transform_5, window_bounds = array<i64: 128, 128>}, {pipeline_mode = #tpu.pipeline_mode<synchronous>, transform_indices = @transform_6, window_bounds = array<i64: 1, 128>}, {pipeline_mode = #tpu.pipeline_mode<synchronous>, transform_indices = @transform_7, window_bounds = array<i64: 128, 128>}, {pipeline_mode = #tpu.pipeline_mode<synchronous>, transform_indices = @transform_8, window_bounds = array<i64: 1, 128>}, {pipeline_mode = #tpu.pipeline_mode<synchronous>, transform_indices = @transform_9, window_bounds = array<i64: 128, 128>}, {pipeline_mode = #tpu.pipeline_mode<synchronous>, transform_indices = @transform_10, window_bounds = array<i64: 1, 128>}, {transform_indices = @transform_11, window_bounds = array<i64: 8, 128>}, {transform_indices = @transform_12, window_bounds = array<i64: 8, 128>}, {transform_indices = @transform_13, window_bounds = array<i64: 8, 128>}]} {
    %c0 = arith.constant 0 : index
    %c0_0 = arith.constant 0 : index
    %0 = vector.load %arg1[%c0, %c0_0] : memref<8x64xf32, #tpu.memory_space<vmem>>, vector<8x64xf32>
    %1 = arith.truncf %0 : vector<8x64xf32> to vector<8x64xbf16>
    %c0_1 = arith.constant 0 : index
    %c0_2 = arith.constant 0 : index
    %2 = vector.load %arg2[%c0_1, %c0_2] : memref<64x128xbf16, #tpu.memory_space<vmem>>, vector<64x128xbf16>
    %cst = arith.constant dense<0.000000e+00> : vector<8x128xf32>
    %3 = tpu.matmul %1, %2, %cst {dimension_numbers = #tpu.dot_dimension_numbers<[1], [0], [0], [1], [0, 0, 1, 1], [], []>} : vector<8x64xbf16>, vector<64x128xbf16>, vector<8x128xf32> -> vector<8x128xf32>
    %c0_3 = arith.constant 0 : index
    %c0_4 = arith.constant 0 : index
    %4 = vector.load %arg3[%c0_3, %c0_4] : memref<1x128xf32, #tpu.memory_space<vmem>>, vector<1x128xf32>
    %5 = vector.broadcast %4 : vector<1x128xf32> to vector<8x128xf32>
    %6 = arith.addf %3, %5 : vector<8x128xf32>
    %cst_5 = arith.constant 0.000000e+00 : f32
    %7 = vector.broadcast %cst_5 : f32 to vector<8x128xf32>
    %8 = arith.maximumf %6, %7 : vector<8x128xf32>
    %9 = arith.truncf %8 : vector<8x128xf32> to vector<8x128xbf16>
    %c0_6 = arith.constant 0 : index
    %c0_7 = arith.constant 0 : index
    %10 = vector.load %arg4[%c0_6, %c0_7] : memref<128x128xbf16, #tpu.memory_space<vmem>>, vector<128x128xbf16>
    %cst_8 = arith.constant dense<0.000000e+00> : vector<8x128xf32>
    %11 = tpu.matmul %9, %10, %cst_8 {dimension_numbers = #tpu.dot_dimension_numbers<[1], [0], [0], [1], [0, 0, 1, 1], [], []>} : vector<8x128xbf16>, vector<128x128xbf16>, vector<8x128xf32> -> vector<8x128xf32>
    %c0_9 = arith.constant 0 : index
    %c0_10 = arith.constant 0 : index
    %12 = vector.load %arg5[%c0_9, %c0_10] : memref<1x128xf32, #tpu.memory_space<vmem>>, vector<1x128xf32>
    %13 = vector.broadcast %12 : vector<1x128xf32> to vector<8x128xf32>
    %14 = arith.addf %11, %13 : vector<8x128xf32>
    %15 = arith.truncf %14 : vector<8x128xf32> to vector<8x128xbf16>
    %c0_11 = arith.constant 0 : index
    %c0_12 = arith.constant 0 : index
    %16 = vector.load %arg6[%c0_11, %c0_12] : memref<128x128xbf16, #tpu.memory_space<vmem>>, vector<128x128xbf16>
    %cst_13 = arith.constant dense<0.000000e+00> : vector<8x128xf32>
    %17 = tpu.matmul %15, %16, %cst_13 {dimension_numbers = #tpu.dot_dimension_numbers<[1], [0], [0], [1], [0, 0, 1, 1], [], []>} : vector<8x128xbf16>, vector<128x128xbf16>, vector<8x128xf32> -> vector<8x128xf32>
    %c0_14 = arith.constant 0 : index
    %c0_15 = arith.constant 0 : index
    %18 = vector.load %arg7[%c0_14, %c0_15] : memref<1x128xf32, #tpu.memory_space<vmem>>, vector<1x128xf32>
    %19 = vector.broadcast %18 : vector<1x128xf32> to vector<8x128xf32>
    %20 = arith.addf %17, %19 : vector<8x128xf32>
    %cst_16 = arith.constant 0.000000e+00 : f32
    %21 = vector.broadcast %cst_16 : f32 to vector<8x128xf32>
    %22 = arith.maximumf %20, %21 : vector<8x128xf32>
    %23 = arith.truncf %22 : vector<8x128xf32> to vector<8x128xbf16>
    %c0_17 = arith.constant 0 : index
    %c0_18 = arith.constant 0 : index
    %24 = vector.load %arg8[%c0_17, %c0_18] : memref<128x128xbf16, #tpu.memory_space<vmem>>, vector<128x128xbf16>
    %cst_19 = arith.constant dense<0.000000e+00> : vector<8x128xf32>
    %25 = tpu.matmul %23, %24, %cst_19 {dimension_numbers = #tpu.dot_dimension_numbers<[1], [0], [0], [1], [0, 0, 1, 1], [], []>} : vector<8x128xbf16>, vector<128x128xbf16>, vector<8x128xf32> -> vector<8x128xf32>
    %c0_20 = arith.constant 0 : index
    %c0_21 = arith.constant 0 : index
    %26 = vector.load %arg9[%c0_20, %c0_21] : memref<1x128xf32, #tpu.memory_space<vmem>>, vector<1x128xf32>
    %27 = vector.broadcast %26 : vector<1x128xf32> to vector<8x128xf32>
    %28 = arith.addf %25, %27 : vector<8x128xf32>
    %29 = arith.mulf %14, %14 : vector<8x128xf32>
    %cst_22 = arith.constant dense<0.000000e+00> : vector<8xf32>
    %30 = vector.multi_reduction <add>, %29, %cst_22 [1] : vector<8x128xf32> to vector<8xf32>
    %31 = vector.shape_cast %30 : vector<8xf32> to vector<8x1xf32>
    %32 = arith.truncf %14 : vector<8x128xf32> to vector<8x128xbf16>
    %c0_23 = arith.constant 0 : index
    %c0_24 = arith.constant 0 : index
    %33 = vector.load %arg10[%c0_23, %c0_24] : memref<128x128xbf16, #tpu.memory_space<vmem>>, vector<128x128xbf16>
    %cst_25 = arith.constant dense<0.000000e+00> : vector<8x128xf32>
    %34 = tpu.matmul %32, %33, %cst_25 {dimension_numbers = #tpu.dot_dimension_numbers<[1], [0], [0], [1], [0, 0, 1, 1], [], []>} : vector<8x128xbf16>, vector<128x128xbf16>, vector<8x128xf32> -> vector<8x128xf32>
    %c0_26 = arith.constant 0 : index
    %c0_27 = arith.constant 0 : index
    %35 = vector.load %arg11[%c0_26, %c0_27] : memref<1x128xf32, #tpu.memory_space<vmem>>, vector<1x128xf32>
    %36 = vector.broadcast %31 : vector<8x1xf32> to vector<8x128xf32>
    %37 = vector.broadcast %35 : vector<1x128xf32> to vector<8x128xf32>
    %38 = arith.addf %36, %37 : vector<8x128xf32>
    %cst_28 = arith.constant 2.000000e+00 : f32
    %39 = vector.broadcast %cst_28 : f32 to vector<8x128xf32>
    %40 = arith.mulf %39, %34 : vector<8x128xf32>
    %41 = arith.subf %38, %40 : vector<8x128xf32>
    %cst_29 = arith.constant 0.000000e+00 : f32
    %42 = vector.broadcast %cst_29 : f32 to vector<8x128xf32>
    %43 = arith.maximumf %41, %42 : vector<8x128xf32>
    %cst_30 = arith.constant 1.000000e+00 : f32
    %44 = vector.broadcast %cst_30 : f32 to vector<8x128xf32>
    %45 = arith.mulf %43, %44 : vector<8x128xf32>
    %cst_31 = arith.constant 1.000000e+00 : f32
    %46 = vector.broadcast %cst_31 : f32 to vector<8x128xf32>
    %47 = arith.addf %46, %45 : vector<8x128xf32>
    %48 = tpu.reciprocal %47 {approx = true} : vector<8x128xf32> -> vector<8x128xf32>
    %49 = arith.mulf %48, %48 : vector<8x128xf32>
    %cst_32 = arith.constant dense<0.000000e+00> : vector<8xf32>
    %50 = vector.multi_reduction <add>, %49, %cst_32 [1] : vector<8x128xf32> to vector<8xf32>
    %51 = vector.shape_cast %50 : vector<8xf32> to vector<8x1xf32>
    %52 = tpu.reciprocal %51 {approx = true} : vector<8x1xf32> -> vector<8x1xf32>
    %53 = vector.broadcast %52 : vector<8x1xf32> to vector<8x128xf32>
    %54 = arith.mulf %49, %53 : vector<8x128xf32>
    %c0_33 = arith.constant 0 : index
    %c0_34 = arith.constant 0 : index
    %55 = vector.load %arg12[%c0_33, %c0_34] : memref<8x128xf32, #tpu.memory_space<vmem>>, vector<8x128xf32>
    tpu.vector_store %arg12[%c0_33, %c0_34], %14 {strides = array<i32>} : memref<8x128xf32, #tpu.memory_space<vmem>>, vector<8x128xf32>,
    %c0_35 = arith.constant 0 : index
    %c0_36 = arith.constant 0 : index
    %56 = vector.load %arg13[%c0_35, %c0_36] : memref<8x128xf32, #tpu.memory_space<vmem>>, vector<8x128xf32>
    tpu.vector_store %arg13[%c0_35, %c0_36], %54 {strides = array<i32>} : memref<8x128xf32, #tpu.memory_space<vmem>>, vector<8x128xf32>,
    %57 = arith.truncf %28 : vector<8x128xf32> to vector<8x128xbf16>
    %c0_37 = arith.constant 0 : index
    %c0_38 = arith.constant 0 : index
    %58 = vector.load %arg14[%c0_37, %c0_38] : memref<8x128xbf16, #tpu.memory_space<vmem>>, vector<8x128xbf16>
    tpu.vector_store %arg14[%c0_37, %c0_38], %57 {strides = array<i32>} : memref<8x128xbf16, #tpu.memory_space<vmem>>, vector<8x128xbf16>,
    return
  }
  func.func @transform_0(%arg0: i32) -> (i32, i32) {
    %c0_i32 = arith.constant 0 : i32
    %c0_i32_0 = arith.constant 0 : i32
    return %arg0, %c0_i32 : i32, i32
  }
  func.func @transform_1(%arg0: i32) -> (i32, i32) {
    %c0_i32 = arith.constant 0 : i32
    %c0_i32_0 = arith.constant 0 : i32
    %c0_i32_1 = arith.constant 0 : i32
    return %c0_i32, %c0_i32_0 : i32, i32
  }
  func.func @transform_2(%arg0: i32) -> (i32, i32) {
    %c0_i32 = arith.constant 0 : i32
    %c0_i32_0 = arith.constant 0 : i32
    %c0_i32_1 = arith.constant 0 : i32
    return %c0_i32, %c0_i32_0 : i32, i32
  }
  func.func @transform_3(%arg0: i32) -> (i32, i32) {
    %c0_i32 = arith.constant 0 : i32
    %c0_i32_0 = arith.constant 0 : i32
    %c0_i32_1 = arith.constant 0 : i32
    return %c0_i32, %c0_i32_0 : i32, i32
  }
  func.func @transform_4(%arg0: i32) -> (i32, i32) {
    %c0_i32 = arith.constant 0 : i32
    %c0_i32_0 = arith.constant 0 : i32
    %c0_i32_1 = arith.constant 0 : i32
    return %c0_i32, %c0_i32_0 : i32, i32
  }
  func.func @transform_5(%arg0: i32) -> (i32, i32) {
    %c0_i32 = arith.constant 0 : i32
    %c0_i32_0 = arith.constant 0 : i32
    %c0_i32_1 = arith.constant 0 : i32
    return %c0_i32, %c0_i32_0 : i32, i32
  }
  func.func @transform_6(%arg0: i32) -> (i32, i32) {
    %c0_i32 = arith.constant 0 : i32
    %c0_i32_0 = arith.constant 0 : i32
    %c0_i32_1 = arith.constant 0 : i32
    return %c0_i32, %c0_i32_0 : i32, i32
  }
  func.func @transform_7(%arg0: i32) -> (i32, i32) {
    %c0_i32 = arith.constant 0 : i32
    %c0_i32_0 = arith.constant 0 : i32
    %c0_i32_1 = arith.constant 0 : i32
    return %c0_i32, %c0_i32_0 : i32, i32
  }
  func.func @transform_8(%arg0: i32) -> (i32, i32) {
    %c0_i32 = arith.constant 0 : i32
    %c0_i32_0 = arith.constant 0 : i32
    %c0_i32_1 = arith.constant 0 : i32
    return %c0_i32, %c0_i32_0 : i32, i32
  }
  func.func @transform_9(%arg0: i32) -> (i32, i32) {
    %c0_i32 = arith.constant 0 : i32
    %c0_i32_0 = arith.constant 0 : i32
    %c0_i32_1 = arith.constant 0 : i32
    return %c0_i32, %c0_i32_0 : i32, i32
  }
  func.func @transform_10(%arg0: i32) -> (i32, i32) {
    %c0_i32 = arith.constant 0 : i32
    %c0_i32_0 = arith.constant 0 : i32
    %c0_i32_1 = arith.constant 0 : i32
    return %c0_i32, %c0_i32_0 : i32, i32
  }
  func.func @transform_11(%arg0: i32) -> (i32, i32) {
    %c0_i32 = arith.constant 0 : i32
    %c0_i32_0 = arith.constant 0 : i32
    return %arg0, %c0_i32 : i32, i32
  }
  func.func @transform_12(%arg0: i32) -> (i32, i32) {
    %c0_i32 = arith.constant 0 : i32
    %c0_i32_0 = arith.constant 0 : i32
    return %arg0, %c0_i32 : i32, i32
  }
  func.func @transform_13(%arg0: i32) -> (i32, i32) {
    %c0_i32 = arith.constant 0 : i32
    %c0_i32_0 = arith.constant 0 : i32
    return %arg0, %c0_i32 : i32, i32
  }
}

</mosaic_0001>

<llo_original>
// kernel: tpu_custom_call.1
$region0: #{tpu_custom_call.1}
  #allocation0 [shape = 'u32[]', space=smem, size = 0x4, offset = 0x4, fixed_abs, tag = 'smem constant byte address 0x4 - core index']
  #allocation1 [shape = 'u32[144,128]{1,0:T(1,128)}', space=vmem, size = 0x12000, scoped, tag = 'internal scratch']
  %s0 = inlined_call_operand.hbm [shape: f32[8,64], index: 0, kind: input, shape index: {}]
  %s1 = inlined_call_operand.hbm [shape: bf16[64,128], index: 1, kind: input, shape index: {}]
  %s2 = inlined_call_operand.vmem [shape: f32[1,128], index: 2, kind: input, shape index: {}]
  %s3 = inlined_call_operand.hbm [shape: bf16[128,128], index: 3, kind: input, shape index: {}]
  %s4 = inlined_call_operand.vmem [shape: f32[1,128], index: 4, kind: input, shape index: {}]
  %s5 = inlined_call_operand.hbm [shape: bf16[128,128], index: 5, kind: input, shape index: {}]
  %s6 = inlined_call_operand.vmem [shape: f32[1,128], index: 6, kind: input, shape index: {}]
  %s7 = inlined_call_operand.hbm [shape: bf16[128,128], index: 7, kind: input, shape index: {}]
  %s8 = inlined_call_operand.vmem [shape: f32[1,128], index: 8, kind: input, shape index: {}]
  %s9 = inlined_call_operand.hbm [shape: bf16[128,128], index: 9, kind: input, shape index: {}]
  %s10 = inlined_call_operand.vmem [shape: f32[1,128], index: 10, kind: input, shape index: {}]
  %s11 = inlined_call_operand.hbm [shape: f32[8,128], index: 11, kind: output, shape index: {0}]
  %s12 = inlined_call_operand.hbm [shape: f32[8,128], index: 12, kind: output, shape index: {1}]
  %s13 = inlined_call_operand.hbm [shape: bf16[8,128], index: 13, kind: output, shape index: {2}]
  %14 = xla_tuple %s11, %s12, %s13
  %s15 = sld [smem:[#allocation0]]
  $region94: #{tpu_custom_call.1} parent=0
    _
  %s17 = ssub.s32 1, %s15
  %s18 = scalar_select 0, %s17, %s15
  $region1: #{tpu_custom_call.1} parent=0
    #allocation2 [shape = 'u8[4096]{0}', space=vmem, size = 0x1000, scoped, tag = 'input window, operand 0, single buffered']
    #allocation3 [shape = 's32[1]{0}', space=sflag, size = 0x4, scoped, tag = 'scoped memory for tpu_custom_call.1']
    #allocation4 [shape = 's32[1]{0}', space=sflag, size = 0x4, scoped, tag = 'scoped memory for tpu_custom_call.1']
    #allocation5 [shape = 'u8[16384]{0}', space=vmem, size = 0x4000, scoped, tag = 'input window, operand 1, single buffered']
    #allocation6 [shape = 's32[1]{0}', space=sflag, size = 0x4, scoped, tag = 'scoped memory for tpu_custom_call.1']
    #allocation7 [shape = 'u8[32768]{0}', space=vmem, size = 0x8000, scoped, tag = 'input window, operand 3, single buffered']
    #allocation8 [shape = 'u8[32768]{0}', space=vmem, size = 0x8000, scoped, tag = 'input window, operand 5, single buffered']
    #allocation9 [shape = 's32[1]{0}', space=sflag, size = 0x4, scoped, tag = 'scoped memory for tpu_custom_call.1']
    #allocation10 [shape = 'u8[32768]{0}', space=vmem, size = 0x8000, scoped, tag = 'input window, operand 7, single buffered']
    #allocation11 [shape = 'u8[32768]{0}', space=vmem, size = 0x8000, scoped, tag = 'input window, operand 9, single buffered']
    #allocation12 [shape = 's32[1]{0}', space=sflag, size = 0x4, scoped, tag = 'scoped memory for tpu_custom_call.1']
    #allocation13 [shape = 'u8[4096]{0}', space=vmem, size = 0x1000, scoped, tag = 'output window, operand 0, single buffered']
    #allocation14 [shape = 'u8[4096]{0}', space=vmem, size = 0x1000, scoped, tag = 'output window, operand 1, single buffered']
    #allocation15 [shape = 's32[1]{0}', space=sflag, size = 0x4, scoped, tag = 'scoped memory for tpu_custom_call.1']
    #allocation16 [shape = 'u8[2048]{0}', space=vmem, size = 0x800, scoped, tag = 'output window, operand 2, single buffered']
    %19 = vsyncpa [#allocation3], 0
    %20 = vsyncpa [#allocation6], 0
    %21 = vsyncpa [#allocation9], 0
    %22 = vsyncpa [#allocation12], 0
    %23 = vsyncpa [#allocation4], 0
    %24 = vsyncpa [#allocation15], 0
    // Predicated region
    $region2: #{tpu_custom_call.1} parent=1 // pred_check
      _
    $region3: #{tpu_custom_call.1} parent=1 // pred_check_branch
      %26 = sbr.rel (0) target = $region5
    $region4: #{tpu_custom_call.1} parent=1 // pred_region
      %s28 = ssub.s32 128, 128
      %29 = vsyncadd [#allocation3], %s28
      %s31 = sshll.u32 [#allocation2], 4
      %s32 = int_to_ptr.vmem [resolvable:$true] %s31
      %34 = dma.hbm_to_vmem [thread:$0]  %s0, 128, %s32, [#allocation3]
    $region5: #{tpu_custom_call.1} parent=1 // pred_fallthru
      _
    // Predicated region
    $region6: #{tpu_custom_call.1} parent=1 // pred_check
      _
    $region7: #{tpu_custom_call.1} parent=1 // pred_check_branch
      %36 = sbr.rel (0) target = $region9
    $region8: #{tpu_custom_call.1} parent=1 // pred_region
      %s38 = ssub.s32 512, 512
      %39 = vsyncadd [#allocation6], %s38
      %s40 = sshll.u32 [#allocation5], 4
      %s41 = int_to_ptr.vmem [resolvable:$true] %s40
      %46 = dma.hbm_to_vmem [thread:$0]  %s1, 512, %s41, [#allocation6], 64, 64, 4
    $region9: #{tpu_custom_call.1} parent=1 // pred_fallthru
      _
    // Predicated region
    $region10: #{tpu_custom_call.1} parent=1 // pred_check
      _
    $region11: #{tpu_custom_call.1} parent=1 // pred_check_branch
      %48 = sbr.rel (0) target = $region13
    $region12: #{tpu_custom_call.1} parent=1 // pred_region
      _
    $region13: #{tpu_custom_call.1} parent=1 // pred_fallthru
      _
    // Predicated region
    $region14: #{tpu_custom_call.1} parent=1 // pred_check
      _
    $region15: #{tpu_custom_call.1} parent=1 // pred_check_branch
      %50 = sbr.rel (0) target = $region17
    $region16: #{tpu_custom_call.1} parent=1 // pred_region
      %s52 = ssub.s32 1024, 1024
      %53 = vsyncadd [#allocation6], %s52
      %s54 = sshll.u32 [#allocation7], 4
      %s55 = int_to_ptr.vmem [resolvable:$true] %s54
      %60 = dma.hbm_to_vmem [thread:$0]  %s3, 1024, %s55, [#allocation6], 64, 64, 4
    $region17: #{tpu_custom_call.1} parent=1 // pred_fallthru
      _
    // Predicated region
    $region18: #{tpu_custom_call.1} parent=1 // pred_check
      _
    $region19: #{tpu_custom_call.1} parent=1 // pred_check_branch
      %62 = sbr.rel (0) target = $region21
    $region20: #{tpu_custom_call.1} parent=1 // pred_region
      _
    $region21: #{tpu_custom_call.1} parent=1 // pred_fallthru
      _
    // Predicated region
    $region22: #{tpu_custom_call.1} parent=1 // pred_check
      _
    $region23: #{tpu_custom_call.1} parent=1 // pred_check_branch
      %64 = sbr.rel (0) target = $region25
    $region24: #{tpu_custom_call.1} parent=1 // pred_region
      %s66 = ssub.s32 1024, 1024
      %67 = vsyncadd [#allocation9], %s66
      %s68 = sshll.u32 [#allocation8], 4
      %s69 = int_to_ptr.vmem [resolvable:$true] %s68
      %74 = dma.hbm_to_vmem [thread:$0]  %s5, 1024, %s69, [#allocation9], 64, 64, 4
    $region25: #{tpu_custom_call.1} parent=1 // pred_fallthru
      _
    // Predicated region
    $region26: #{tpu_custom_call.1} parent=1 // pred_check
      _
    $region27: #{tpu_custom_call.1} parent=1 // pred_check_branch
      %76 = sbr.rel (0) target = $region29
    $region28: #{tpu_custom_call.1} parent=1 // pred_region
      _
    $region29: #{tpu_custom_call.1} parent=1 // pred_fallthru
      _
    // Predicated region
    $region30: #{tpu_custom_call.1} parent=1 // pred_check
      _
    $region31: #{tpu_custom_call.1} parent=1 // pred_check_branch
      %78 = sbr.rel (0) target = $region33
    $region32: #{tpu_custom_call.1} parent=1 // pred_region
      %s80 = ssub.s32 1024, 1024
      %81 = vsyncadd [#allocation9], %s80
      %s82 = sshll.u32 [#allocation10], 4
      %s83 = int_to_ptr.vmem [resolvable:$true] %s82
      %88 = dma.hbm_to_vmem [thread:$0]  %s7, 1024, %s83, [#allocation9], 64, 64, 4
    $region33: #{tpu_custom_call.1} parent=1 // pred_fallthru
      _
    // Predicated region
    $region34: #{tpu_custom_call.1} parent=1 // pred_check
      _
    $region35: #{tpu_custom_call.1} parent=1 // pred_check_branch
      %90 = sbr.rel (0) target = $region37
    $region36: #{tpu_custom_call.1} parent=1 // pred_region
      _
    $region37: #{tpu_custom_call.1} parent=1 // pred_fallthru
      _
    // Predicated region
    $region38: #{tpu_custom_call.1} parent=1 // pred_check
      _
    $region39: #{tpu_custom_call.1} parent=1 // pred_check_branch
      %92 = sbr.rel (0) target = $region41
    $region40: #{tpu_custom_call.1} parent=1 // pred_region
      %s94 = ssub.s32 1024, 1024
      %95 = vsyncadd [#allocation12], %s94
      %s96 = sshll.u32 [#allocation11], 4
      %s97 = int_to_ptr.vmem [resolvable:$true] %s96
      %102 = dma.hbm_to_vmem [thread:$0]  %s9, 1024, %s97, [#allocation12], 64, 64, 4
    $region41: #{tpu_custom_call.1} parent=1 // pred_fallthru
      _
    // Predicated region
    $region42: #{tpu_custom_call.1} parent=1 // pred_check
      _
    $region43: #{tpu_custom_call.1} parent=1 // pred_check_branch
      %104 = sbr.rel (0) target = $region45
    $region44: #{tpu_custom_call.1} parent=1 // pred_region
      _
    $region45: #{tpu_custom_call.1} parent=1 // pred_fallthru
      _
    // Predicated region
    $region46: #{tpu_custom_call.1} parent=1 // pred_check
      _
    $region47: #{tpu_custom_call.1} parent=1 // pred_check_branch
      %106 = sbr.rel (0) target = $region49
    $region48: #{tpu_custom_call.1} parent=1 // pred_region
      %107 = dma.done [#allocation3], 128
    $region49: #{tpu_custom_call.1} parent=1 // pred_fallthru
      _
    // Predicated region
    $region50: #{tpu_custom_call.1} parent=1 // pred_check
      _
    $region51: #{tpu_custom_call.1} parent=1 // pred_check_branch
      %109 = sbr.rel (0) target = $region53
    $region52: #{tpu_custom_call.1} parent=1 // pred_region
      %110 = dma.done [#allocation6], 512
    $region53: #{tpu_custom_call.1} parent=1 // pred_fallthru
      _
    // Predicated region
    $region54: #{tpu_custom_call.1} parent=1 // pred_check
      _
    $region55: #{tpu_custom_call.1} parent=1 // pred_check_branch
      %112 = sbr.rel (0) target = $region57
    $region56: #{tpu_custom_call.1} parent=1 // pred_region
      %113 = dma.done [#allocation6], 1024
    $region57: #{tpu_custom_call.1} parent=1 // pred_fallthru
      _
    // Predicated region
    $region58: #{tpu_custom_call.1} parent=1 // pred_check
      _
    $region59: #{tpu_custom_call.1} parent=1 // pred_check_branch
      %115 = sbr.rel (0) target = $region61
    $region60: #{tpu_custom_call.1} parent=1 // pred_region
      %116 = dma.done [#allocation9], 1024
    $region61: #{tpu_custom_call.1} parent=1 // pred_fallthru
      _
    // Predicated region
    $region62: #{tpu_custom_call.1} parent=1 // pred_check
      _
    $region63: #{tpu_custom_call.1} parent=1 // pred_check_branch
      %118 = sbr.rel (0) target = $region65
    $region64: #{tpu_custom_call.1} parent=1 // pred_region
      %119 = dma.done [#allocation9], 1024
    $region65: #{tpu_custom_call.1} parent=1 // pred_fallthru
      _
    // Predicated region
    $region66: #{tpu_custom_call.1} parent=1 // pred_check
      _
    $region67: #{tpu_custom_call.1} parent=1 // pred_check_branch
      %121 = sbr.rel (0) target = $region69
    $region68: #{tpu_custom_call.1} parent=1 // pred_region
      %122 = dma.done [#allocation12], 1024
    $region69: #{tpu_custom_call.1} parent=1 // pred_fallthru
      _
    %v124 = vld [vmem:[#allocation2] sm:$0xff]
    %v125 = vpack.c.bf16 %v124, %v124
    %v126 = vld [vmem:[#allocation5] sm:$0xf]
    %v127 = vld [vmem:[#allocation5 + $0x4] sm:$0xf]
    %v128 = vld [vmem:[#allocation5 + $0x8] sm:$0xf]
    %v129 = vld [vmem:[#allocation5 + $0xc] sm:$0xf]
    %v130 = vld [vmem:[#allocation5 + $0x10] sm:$0xf]
    %v131 = vld [vmem:[#allocation5 + $0x14] sm:$0xf]
    %v132 = vld [vmem:[#allocation5 + $0x18] sm:$0xf]
    %v133 = vld [vmem:[#allocation5 + $0x1c] sm:$0xf]
    %v134 = vld [vmem:[%s2] sm:$0x1]
    %v136 = vlaneseq
    %v137 = vshrl.u32 %v136, 7
    %v138 = vsub.s32 0, %v137
    %v139 = vrot.slane %v134, %v138
    %v149 = vunpack.c.l.b16 %v126
    %v150 = vunpack.c.l.b16 %v127
    %v151 = vunpack.c.l.b16 %v128
    %v152 = vunpack.c.l.b16 %v129
    %v153 = vunpack.c.l.b16 %v130
    %v154 = vunpack.c.l.b16 %v131
    %v155 = vunpack.c.l.b16 %v132
    %v156 = vunpack.c.l.b16 %v133
    %v157 = vpack.c.b16 %v150, %v149
    %v158 = vpack.c.b16 %v152, %v151
    %v159 = vpack.c.b16 %v154, %v153
    %v160 = vpack.c.b16 %v156, %v155
    %vm165 = vcmask 523264
    %v167 = vsel %vm165, %v125, 0
    %169 = vmatprep.subr.bf16.mxu0 0
    %170 = vmatpush1.bf16.msra.mxu0 0
    %171 = vmatprep.subr.bf16.mxu0 0
    %172 = vmatpush1.bf16.msra.mxu0 0
    %173 = vmatprep.subr.bf16.mxu0 0
    %174 = vmatpush1.bf16.msra.mxu0 0
    %175 = vmatprep.subr.bf16.mxu0 0
    %176 = vmatpush1.bf16.msra.mxu0 0
    %177 = vmatprep.subr.bf16.mxu0 0
    %178 = vmatpush1.bf16.msra.mxu0 %v160
    %179 = vmatprep.subr.bf16.mxu0 0
    %180 = vmatpush1.bf16.msra.mxu0 %v159
    %181 = vmatprep.subr.bf16.mxu0 0
    %182 = vmatpush1.bf16.msra.mxu0 %v158
    %183 = vmatprep.subr.bf16.mxu0 0
    %184 = vmatpush1.bf16.msra.mxu0 %v157
    %185 = vmatprep.subr.bf16.mxu0 0
    %186 = vmatpush2.bf16.msra.mxu0 0
    %187 = vmatprep.subr.bf16.mxu0 0
    %188 = vmatpush2.bf16.msra.mxu0 0
    %189 = vmatprep.subr.bf16.mxu0 0
    %190 = vmatpush2.bf16.msra.mxu0 0
    %191 = vmatprep.subr.bf16.mxu0 0
    %192 = vmatpush2.bf16.msra.mxu0 0
    %193 = vmatprep.subr.bf16.mxu0 0
    %194 = vmatpush2.bf16.msra.mxu0 0
    %195 = vmatprep.subr.bf16.mxu0 0
    %196 = vmatpush2.bf16.msra.mxu0 0
    %197 = vmatprep.subr.bf16.mxu0 0
    %198 = vmatpush2.bf16.msra.mxu0 0
    %199 = vmatprep.subr.bf16.mxu0 0
    %200 = vmatpush2.bf16.msra.mxu0 0
    %201 = vmatprep.mubr.bf16.mxu0 0
    %202 = vmatmul.mubr.bf16.gmra.mxu0 %v167
    %v203 = vpop.f32.mrf.mxu0
    %v204 = vadd.f32 %v139, %v203
    %v205 = vpop.f32.mrf.mxu0
    %v206 = vpop.f32.mrf.mxu0
    %v207 = vpop.f32.mrf.mxu0
    %208 = vdwg.mxu0
    %v209 = vmax.f32 %v204, 0.0
    %v210 = vpack.c.bf16 %v209, %v209
    %v211 = vld [vmem:[#allocation7] sm:$0xf]
    %v212 = vld [vmem:[#allocation7 + $0x4] sm:$0xf]
    %v213 = vld [vmem:[#allocation7 + $0x8] sm:$0xf]
    %v214 = vld [vmem:[#allocation7 + $0xc] sm:$0xf]
    %v215 = vld [vmem:[#allocation7 + $0x10] sm:$0xf]
    %v216 = vld [vmem:[#allocation7 + $0x14] sm:$0xf]
    %v217 = vld [vmem:[#allocation7 + $0x18] sm:$0xf]
    %v218 = vld [vmem:[#allocation7 + $0x1c] sm:$0xf]
    %v219 = vld [vmem:[#allocation7 + $0x20] sm:$0xf]
    %v220 = vld [vmem:[#allocation7 + $0x24] sm:$0xf]
    %v221 = vld [vmem:[#allocation7 + $0x28] sm:$0xf]
    %v222 = vld [vmem:[#allocation7 + $0x2c] sm:$0xf]
    %v223 = vld [vmem:[#allocation7 + $0x30] sm:$0xf]
    %v224 = vld [vmem:[#allocation7 + $0x34] sm:$0xf]
    %v225 = vld [vmem:[#allocation7 + $0x38] sm:$0xf]
    %v226 = vld [vmem:[#allocation7 + $0x3c] sm:$0xf]
    %v227 = vld [vmem:[%s4] sm:$0x1]
    %v229 = vlaneseq
    %v230 = vshrl.u32 %v229, 7
    %v231 = vsub.s32 0, %v230
    %v232 = vrot.slane %v227, %v231
    %v250 = vunpack.c.l.b16 %v211
    %v251 = vunpack.c.l.b16 %v212
    %v252 = vunpack.c.l.b16 %v213
    %v253 = vunpack.c.l.b16 %v214
    %v254 = vunpack.c.l.b16 %v215
    %v255 = vunpack.c.l.b16 %v216
    %v256 = vunpack.c.l.b16 %v217
    %v257 = vunpack.c.l.b16 %v218
    %v258 = vunpack.c.l.b16 %v219
    %v259 = vunpack.c.l.b16 %v220
    %v260 = vunpack.c.l.b16 %v221
    %v261 = vunpack.c.l.b16 %v222
    %v262 = vunpack.c.l.b16 %v223
    %v263 = vunpack.c.l.b16 %v224
    %v264 = vunpack.c.l.b16 %v225
    %v265 = vunpack.c.l.b16 %v226
    %v266 = vpack.c.b16 %v251, %v250
    %v267 = vpack.c.b16 %v253, %v252
    %v268 = vpack.c.b16 %v255, %v254
    %v269 = vpack.c.b16 %v257, %v256
    %v270 = vpack.c.b16 %v259, %v258
    %v271 = vpack.c.b16 %v261, %v260
    %v272 = vpack.c.b16 %v263, %v262
    %v273 = vpack.c.b16 %v265, %v264
    %282 = vmatprep.subr.bf16.mxu0 0
    %283 = vmatpush1.bf16.msra.mxu0 %v273
    %284 = vmatprep.subr.bf16.mxu0 0
    %285 = vmatpush1.bf16.msra.mxu0 %v272
    %286 = vmatprep.subr.bf16.mxu0 0
    %287 = vmatpush1.bf16.msra.mxu0 %v271
    %288 = vmatprep.subr.bf16.mxu0 0
    %289 = vmatpush1.bf16.msra.mxu0 %v270
    %290 = vmatprep.subr.bf16.mxu0 0
    %291 = vmatpush1.bf16.msra.mxu0 %v269
    %292 = vmatprep.subr.bf16.mxu0 0
    %293 = vmatpush1.bf16.msra.mxu0 %v268
    %294 = vmatprep.subr.bf16.mxu0 0
    %295 = vmatpush1.bf16.msra.mxu0 %v267
    %296 = vmatprep.subr.bf16.mxu0 0
    %297 = vmatpush1.bf16.msra.mxu0 %v266
    %298 = vmatprep.subr.bf16.mxu0 0
    %299 = vmatpush2.bf16.msra.mxu0 0
    %300 = vmatprep.subr.bf16.mxu0 0
    %301 = vmatpush2.bf16.msra.mxu0 0
    %302 = vmatprep.subr.bf16.mxu0 0
    %303 = vmatpush2.bf16.msra.mxu0 0
    %304 = vmatprep.subr.bf16.mxu0 0
    %305 = vmatpush2.bf16.msra.mxu0 0
    %306 = vmatprep.subr.bf16.mxu0 0
    %307 = vmatpush2.bf16.msra.mxu0 0
    %308 = vmatprep.subr.bf16.mxu0 0
    %309 = vmatpush2.bf16.msra.mxu0 0
    %310 = vmatprep.subr.bf16.mxu0 0
    %311 = vmatpush2.bf16.msra.mxu0 0
    %312 = vmatprep.subr.bf16.mxu0 0
    %313 = vmatpush2.bf16.msra.mxu0 0
    %314 = vmatprep.mubr.bf16.mxu0 0
    %315 = vmatmul.mubr.bf16.gmra.mxu0 %v210
    %v316 = vpop.f32.mrf.mxu0
    %v317 = vadd.f32 %v232, %v316
    %v318 = vpop.f32.mrf.mxu0
    %v319 = vpop.f32.mrf.mxu0
    %v320 = vpop.f32.mrf.mxu0
    %321 = vdwg.mxu0
    %v322 = vpack.c.bf16 %v317, %v317
    %v323 = vld [vmem:[#allocation8] sm:$0xf]
    %v324 = vld [vmem:[#allocation8 + $0x4] sm:$0xf]
    %v325 = vld [vmem:[#allocation8 + $0x8] sm:$0xf]
    %v326 = vld [vmem:[#allocation8 + $0xc] sm:$0xf]
    %v327 = vld [vmem:[#allocation8 + $0x10] sm:$0xf]
    %v328 = vld [vmem:[#allocation8 + $0x14] sm:$0xf]
    %v329 = vld [vmem:[#allocation8 + $0x18] sm:$0xf]
    %v330 = vld [vmem:[#allocation8 + $0x1c] sm:$0xf]
    %v331 = vld [vmem:[#allocation8 + $0x20] sm:$0xf]
    %v332 = vld [vmem:[#allocation8 + $0x24] sm:$0xf]
    %v333 = vld [vmem:[#allocation8 + $0x28] sm:$0xf]
    %v334 = vld [vmem:[#allocation8 + $0x2c] sm:$0xf]
    %v335 = vld [vmem:[#allocation8 + $0x30] sm:$0xf]
    %v336 = vld [vmem:[#allocation8 + $0x34] sm:$0xf]
    %v337 = vld [vmem:[#allocation8 + $0x38] sm:$0xf]
    %v338 = vld [vmem:[#allocation8 + $0x3c] sm:$0xf]
    %v339 = vld [vmem:[%s6] sm:$0x1]
    %v341 = vlaneseq
    %v342 = vshrl.u32 %v341, 7
    %v343 = vsub.s32 0, %v342
    %v344 = vrot.slane %v339, %v343
    %v362 = vunpack.c.l.b16 %v323
    %v363 = vunpack.c.l.b16 %v324
    %v364 = vunpack.c.l.b16 %v325
    %v365 = vunpack.c.l.b16 %v326
    %v366 = vunpack.c.l.b16 %v327
    %v367 = vunpack.c.l.b16 %v328
    %v368 = vunpack.c.l.b16 %v329
    %v369 = vunpack.c.l.b16 %v330
    %v370 = vunpack.c.l.b16 %v331
    %v371 = vunpack.c.l.b16 %v332
    %v372 = vunpack.c.l.b16 %v333
    %v373 = vunpack.c.l.b16 %v334
    %v374 = vunpack.c.l.b16 %v335
    %v375 = vunpack.c.l.b16 %v336
    %v376 = vunpack.c.l.b16 %v337
    %v377 = vunpack.c.l.b16 %v338
    %v378 = vpack.c.b16 %v363, %v362
    %v379 = vpack.c.b16 %v365, %v364
    %v380 = vpack.c.b16 %v367, %v366
    %v381 = vpack.c.b16 %v369, %v368
    %v382 = vpack.c.b16 %v371, %v370
    %v383 = vpack.c.b16 %v373, %v372
    %v384 = vpack.c.b16 %v375, %v374
    %v385 = vpack.c.b16 %v377, %v376
    %394 = vmatprep.subr.bf16.mxu0 0
    %395 = vmatpush1.bf16.msra.mxu0 %v385
    %396 = vmatprep.subr.bf16.mxu0 0
    %397 = vmatpush1.bf16.msra.mxu0 %v384
    %398 = vmatprep.subr.bf16.mxu0 0
    %399 = vmatpush1.bf16.msra.mxu0 %v383
    %400 = vmatprep.subr.bf16.mxu0 0
    %401 = vmatpush1.bf16.msra.mxu0 %v382
    %402 = vmatprep.subr.bf16.mxu0 0
    %403 = vmatpush1.bf16.msra.mxu0 %v381
    %404 = vmatprep.subr.bf16.mxu0 0
    %405 = vmatpush1.bf16.msra.mxu0 %v380
    %406 = vmatprep.subr.bf16.mxu0 0
    %407 = vmatpush1.bf16.msra.mxu0 %v379
    %408 = vmatprep.subr.bf16.mxu0 0
    %409 = vmatpush1.bf16.msra.mxu0 %v378
    %410 = vmatprep.subr.bf16.mxu0 0
    %411 = vmatpush2.bf16.msra.mxu0 0
    %412 = vmatprep.subr.bf16.mxu0 0
    %413 = vmatpush2.bf16.msra.mxu0 0
    %414 = vmatprep.subr.bf16.mxu0 0
    %415 = vmatpush2.bf16.msra.mxu0 0
    %416 = vmatprep.subr.bf16.mxu0 0
    %417 = vmatpush2.bf16.msra.mxu0 0
    %418 = vmatprep.subr.bf16.mxu0 0
    %419 = vmatpush2.bf16.msra.mxu0 0
    %420 = vmatprep.subr.bf16.mxu0 0
    %421 = vmatpush2.bf16.msra.mxu0 0
    %422 = vmatprep.subr.bf16.mxu0 0
    %423 = vmatpush2.bf16.msra.mxu0 0
    %424 = vmatprep.subr.bf16.mxu0 0
    %425 = vmatpush2.bf16.msra.mxu0 0
    %426 = vmatprep.mubr.bf16.mxu0 0
    %427 = vmatmul.mubr.bf16.gmra.mxu0 %v322
    %v428 = vpop.f32.mrf.mxu0
    %v429 = vadd.f32 %v344, %v428
    %v430 = vpop.f32.mrf.mxu0
    %v431 = vpop.f32.mrf.mxu0
    %v432 = vpop.f32.mrf.mxu0
    %433 = vdwg.mxu0
    %v434 = vmax.f32 %v429, 0.0
    %v435 = vpack.c.bf16 %v434, %v434
    %v436 = vld [vmem:[#allocation10] sm:$0xf]
    %v437 = vld [vmem:[#allocation10 + $0x4] sm:$0xf]
    %v438 = vld [vmem:[#allocation10 + $0x8] sm:$0xf]
    %v439 = vld [vmem:[#allocation10 + $0xc] sm:$0xf]
    %v440 = vld [vmem:[#allocation10 + $0x10] sm:$0xf]
    %v441 = vld [vmem:[#allocation10 + $0x14] sm:$0xf]
    %v442 = vld [vmem:[#allocation10 + $0x18] sm:$0xf]
    %v443 = vld [vmem:[#allocation10 + $0x1c] sm:$0xf]
    %v444 = vld [vmem:[#allocation10 + $0x20] sm:$0xf]
    %v445 = vld [vmem:[#allocation10 + $0x24] sm:$0xf]
    %v446 = vld [vmem:[#allocation10 + $0x28] sm:$0xf]
    %v447 = vld [vmem:[#allocation10 + $0x2c] sm:$0xf]
    %v448 = vld [vmem:[#allocation10 + $0x30] sm:$0xf]
    %v449 = vld [vmem:[#allocation10 + $0x34] sm:$0xf]
    %v450 = vld [vmem:[#allocation10 + $0x38] sm:$0xf]
    %v451 = vld [vmem:[#allocation10 + $0x3c] sm:$0xf]
    %v452 = vld [vmem:[%s8] sm:$0x1]
    %v454 = vlaneseq
    %v455 = vshrl.u32 %v454, 7
    %v456 = vsub.s32 0, %v455
    %v457 = vrot.slane %v452, %v456
    %v475 = vunpack.c.l.b16 %v436
    %v476 = vunpack.c.l.b16 %v437
    %v477 = vunpack.c.l.b16 %v438
    %v478 = vunpack.c.l.b16 %v439
    %v479 = vunpack.c.l.b16 %v440
    %v480 = vunpack.c.l.b16 %v441
    %v481 = vunpack.c.l.b16 %v442
    %v482 = vunpack.c.l.b16 %v443
    %v483 = vunpack.c.l.b16 %v444
    %v484 = vunpack.c.l.b16 %v445
    %v485 = vunpack.c.l.b16 %v446
    %v486 = vunpack.c.l.b16 %v447
    %v487 = vunpack.c.l.b16 %v448
    %v488 = vunpack.c.l.b16 %v449
    %v489 = vunpack.c.l.b16 %v450
    %v490 = vunpack.c.l.b16 %v451
    %v491 = vpack.c.b16 %v476, %v475
    %v492 = vpack.c.b16 %v478, %v477
    %v493 = vpack.c.b16 %v480, %v479
    %v494 = vpack.c.b16 %v482, %v481
    %v495 = vpack.c.b16 %v484, %v483
    %v496 = vpack.c.b16 %v486, %v485
    %v497 = vpack.c.b16 %v488, %v487
    %v498 = vpack.c.b16 %v490, %v489
    %507 = vmatprep.subr.bf16.mxu0 0
    %508 = vmatpush1.bf16.msra.mxu0 %v498
    %509 = vmatprep.subr.bf16.mxu0 0
    %510 = vmatpush1.bf16.msra.mxu0 %v497
    %511 = vmatprep.subr.bf16.mxu0 0
    %512 = vmatpush1.bf16.msra.mxu0 %v496
    %513 = vmatprep.subr.bf16.mxu0 0
    %514 = vmatpush1.bf16.msra.mxu0 %v495
    %515 = vmatprep.subr.bf16.mxu0 0
    %516 = vmatpush1.bf16.msra.mxu0 %v494
    %517 = vmatprep.subr.bf16.mxu0 0
    %518 = vmatpush1.bf16.msra.mxu0 %v493
    %519 = vmatprep.subr.bf16.mxu0 0
    %520 = vmatpush1.bf16.msra.mxu0 %v492
    %521 = vmatprep.subr.bf16.mxu0 0
    %522 = vmatpush1.bf16.msra.mxu0 %v491
    %523 = vmatprep.subr.bf16.mxu0 0
    %524 = vmatpush2.bf16.msra.mxu0 0
    %525 = vmatprep.subr.bf16.mxu0 0
    %526 = vmatpush2.bf16.msra.mxu0 0
    %527 = vmatprep.subr.bf16.mxu0 0
    %528 = vmatpush2.bf16.msra.mxu0 0
    %529 = vmatprep.subr.bf16.mxu0 0
    %530 = vmatpush2.bf16.msra.mxu0 0
    %531 = vmatprep.subr.bf16.mxu0 0
    %532 = vmatpush2.bf16.msra.mxu0 0
    %533 = vmatprep.subr.bf16.mxu0 0
    %534 = vmatpush2.bf16.msra.mxu0 0
    %535 = vmatprep.subr.bf16.mxu0 0
    %536 = vmatpush2.bf16.msra.mxu0 0
    %537 = vmatprep.subr.bf16.mxu0 0
    %538 = vmatpush2.bf16.msra.mxu0 0
    %539 = vmatprep.mubr.bf16.mxu0 0
    %540 = vmatmul.mubr.bf16.gmra.mxu0 %v435
    %v541 = vpop.f32.mrf.mxu0
    %v542 = vadd.f32 %v457, %v541
    %v543 = vpop.f32.mrf.mxu0
    %v544 = vpop.f32.mrf.mxu0
    %v545 = vpop.f32.mrf.mxu0
    %546 = vdwg.mxu0
    %v547 = vmul.f32 %v317, %v317
    %548 = vadd.xlane.f32.xlu0 %v547
    %v549 = vpop.xlane.xlu0 %548
    %v550 = vld [vmem:[#allocation11] sm:$0xf]
    %v551 = vld [vmem:[#allocation11 + $0x4] sm:$0xf]
    %v552 = vld [vmem:[#allocation11 + $0x8] sm:$0xf]
    %v553 = vld [vmem:[#allocation11 + $0xc] sm:$0xf]
    %v554 = vld [vmem:[#allocation11 + $0x10] sm:$0xf]
    %v555 = vld [vmem:[#allocation11 + $0x14] sm:$0xf]
    %v556 = vld [vmem:[#allocation11 + $0x18] sm:$0xf]
    %v557 = vld [vmem:[#allocation11 + $0x1c] sm:$0xf]
    %v558 = vld [vmem:[#allocation11 + $0x20] sm:$0xf]
    %v559 = vld [vmem:[#allocation11 + $0x24] sm:$0xf]
    %v560 = vld [vmem:[#allocation11 + $0x28] sm:$0xf]
    %v561 = vld [vmem:[#allocation11 + $0x2c] sm:$0xf]
    %v562 = vld [vmem:[#allocation11 + $0x30] sm:$0xf]
    %v563 = vld [vmem:[#allocation11 + $0x34] sm:$0xf]
    %v564 = vld [vmem:[#allocation11 + $0x38] sm:$0xf]
    %v565 = vld [vmem:[#allocation11 + $0x3c] sm:$0xf]
    %v582 = vunpack.c.l.b16 %v550
    %v583 = vunpack.c.l.b16 %v551
    %v584 = vunpack.c.l.b16 %v552
    %v585 = vunpack.c.l.b16 %v553
    %v586 = vunpack.c.l.b16 %v554
    %v587 = vunpack.c.l.b16 %v555
    %v588 = vunpack.c.l.b16 %v556
    %v589 = vunpack.c.l.b16 %v557
    %v590 = vunpack.c.l.b16 %v558
    %v591 = vunpack.c.l.b16 %v559
    %v592 = vunpack.c.l.b16 %v560
    %v593 = vunpack.c.l.b16 %v561
    %v594 = vunpack.c.l.b16 %v562
    %v595 = vunpack.c.l.b16 %v563
    %v596 = vunpack.c.l.b16 %v564
    %v597 = vunpack.c.l.b16 %v565
    %v598 = vpack.c.b16 %v583, %v582
    %v599 = vpack.c.b16 %v585, %v584
    %v600 = vpack.c.b16 %v587, %v586
    %v601 = vpack.c.b16 %v589, %v588
    %v602 = vpack.c.b16 %v591, %v590
    %v603 = vpack.c.b16 %v593, %v592
    %v604 = vpack.c.b16 %v595, %v594
    %v605 = vpack.c.b16 %v597, %v596
    %614 = vmatprep.subr.bf16.mxu0 0
    %615 = vmatpush1.bf16.msra.mxu0 %v605
    %616 = vmatprep.subr.bf16.mxu0 0
    %617 = vmatpush1.bf16.msra.mxu0 %v604
    %618 = vmatprep.subr.bf16.mxu0 0
    %619 = vmatpush1.bf16.msra.mxu0 %v603
    %620 = vmatprep.subr.bf16.mxu0 0
    %621 = vmatpush1.bf16.msra.mxu0 %v602
    %622 = vmatprep.subr.bf16.mxu0 0
    %623 = vmatpush1.bf16.msra.mxu0 %v601
    %624 = vmatprep.subr.bf16.mxu0 0
    %625 = vmatpush1.bf16.msra.mxu0 %v600
    %626 = vmatprep.subr.bf16.mxu0 0
    %627 = vmatpush1.bf16.msra.mxu0 %v599
    %628 = vmatprep.subr.bf16.mxu0 0
    %629 = vmatpush1.bf16.msra.mxu0 %v598
    %630 = vmatprep.subr.bf16.mxu0 0
    %631 = vmatpush2.bf16.msra.mxu0 0
    %632 = vmatprep.subr.bf16.mxu0 0
    %633 = vmatpush2.bf16.msra.mxu0 0
    %634 = vmatprep.subr.bf16.mxu0 0
    %635 = vmatpush2.bf16.msra.mxu0 0
    %636 = vmatprep.subr.bf16.mxu0 0
    %637 = vmatpush2.bf16.msra.mxu0 0
    %638 = vmatprep.subr.bf16.mxu0 0
    %639 = vmatpush2.bf16.msra.mxu0 0
    %640 = vmatprep.subr.bf16.mxu0 0
    %641 = vmatpush2.bf16.msra.mxu0 0
    %642 = vmatprep.subr.bf16.mxu0 0
    %643 = vmatpush2.bf16.msra.mxu0 0
    %644 = vmatprep.subr.bf16.mxu0 0
    %645 = vmatpush2.bf16.msra.mxu0 0
    %646 = vmatprep.mubr.bf16.mxu0 0
    %647 = vmatmul.mubr.bf16.gmra.mxu0 %v322
    %v648 = vpop.f32.mrf.mxu0
    %v649 = vadd.f32 0.0, %v648
    %v650 = vpop.f32.mrf.mxu0
    %v651 = vpop.f32.mrf.mxu0
    %v652 = vpop.f32.mrf.mxu0
    %653 = vdwg.mxu0
    %v654 = vld [vmem:[%s10] sm:$0x1]
    %v656 = vlaneseq
    %v657 = vshrl.u32 %v656, 7
    %v658 = vsub.s32 0, %v657
    %v659 = vrot.slane %v654, %v658
    %v661 = vadd.f32 %v549, %v659
    %v662 = vmul.f32 %v649, 2.0
    %v663 = vsub.f32 %v661, %v662
    %v664 = vmax.f32 %v663, 0.0
    %v665 = vadd.f32 %v664, 1.0
    %v666 = vrcp.pop %v665
    %v667 = vmul.f32 %v666, %v666
    %668 = vadd.xlane.f32.xlu0 %v667
    %v669 = vpop.xlane.xlu0 %668
    %v670 = vrcp.pop %v669
    %v671 = vmul.f32 %v667, %v670
    %672 = vst [vmem:[#allocation13] sm:$0xff] %v317
    %673 = vst [vmem:[#allocation14] sm:$0xff] %v671
    %v674 = vpack.c.bf16 %v542, %v542
    %675 = vst [vmem:[#allocation16] sm:$0xf] %v674
    // Predicated region
    $region70: #{tpu_custom_call.1} parent=1 // pred_check
      _
    $region71: #{tpu_custom_call.1} parent=1 // pred_check_branch
      %677 = sbr.rel (0) target = $region73
    $region72: #{tpu_custom_call.1} parent=1 // pred_region
      %s679 = ssub.s32 128, 128
      %680 = vsyncadd [#allocation4], %s679
      %s682 = sshll.u32 [#allocation13], 4
      %s683 = int_to_ptr.vmem [resolvable:$true] %s682
      %685 = dma.vmem_to_hbm [thread:$0]  %s683, 128, %s11, [#allocation4]
    $region73: #{tpu_custom_call.1} parent=1 // pred_fallthru
      _
    // Predicated region
    $region74: #{tpu_custom_call.1} parent=1 // pred_check
      _
    $region75: #{tpu_custom_call.1} parent=1 // pred_check_branch
      %687 = sbr.rel (0) target = $region77
    $region76: #{tpu_custom_call.1} parent=1 // pred_region
      %s689 = ssub.s32 128, 128
      %690 = vsyncadd [#allocation15], %s689
      %s692 = sshll.u32 [#allocation14], 4
      %s693 = int_to_ptr.vmem [resolvable:$true] %s692
      %695 = dma.vmem_to_hbm [thread:$0]  %s693, 128, %s12, [#allocation15]
    $region77: #{tpu_custom_call.1} parent=1 // pred_fallthru
      _
    // Predicated region
    $region78: #{tpu_custom_call.1} parent=1 // pred_check
      _
    $region79: #{tpu_custom_call.1} parent=1 // pred_check_branch
      %697 = sbr.rel (0) target = $region81
    $region80: #{tpu_custom_call.1} parent=1 // pred_region
      %s699 = ssub.s32 64, 64
      %700 = vsyncadd [#allocation15], %s699
      %s702 = sshll.u32 [#allocation16], 4
      %s703 = int_to_ptr.vmem [resolvable:$true] %s702
      %705 = dma.vmem_to_hbm [thread:$0]  %s703, 64, %s13, [#allocation15]
    $region81: #{tpu_custom_call.1} parent=1 // pred_fallthru
      _
    // Predicated region
    $region82: #{tpu_custom_call.1} parent=1 // pred_check
      _
    $region83: #{tpu_custom_call.1} parent=1 // pred_check_branch
      %707 = sbr.rel (0) target = $region85
    $region84: #{tpu_custom_call.1} parent=1 // pred_region
      %708 = dma.done [#allocation4], 128
    $region85: #{tpu_custom_call.1} parent=1 // pred_fallthru
      _
    // Predicated region
    $region86: #{tpu_custom_call.1} parent=1 // pred_check
      _
    $region87: #{tpu_custom_call.1} parent=1 // pred_check_branch
      %710 = sbr.rel (0) target = $region89
    $region88: #{tpu_custom_call.1} parent=1 // pred_region
      %711 = dma.done [#allocation15], 128
    $region89: #{tpu_custom_call.1} parent=1 // pred_fallthru
      _
    // Predicated region
    $region90: #{tpu_custom_call.1} parent=1 // pred_check
      _
    $region91: #{tpu_custom_call.1} parent=1 // pred_check_branch
      %713 = sbr.rel (0) target = $region93
    $region92: #{tpu_custom_call.1} parent=1 // pred_region
      %714 = dma.done [#allocation15], 64
    $region93: #{tpu_custom_call.1} parent=1 // pred_fallthru
      _
    %715 = vsyncpa [#allocation3], 1
    %716 = vsyncpa [#allocation6], 1
    %717 = vsyncpa [#allocation9], 1
    %718 = vsyncpa [#allocation12], 1
    %719 = vsyncpa [#allocation4], 1
    %720 = vsyncpa [#allocation15], 1

</llo_original>
